<compile_context>
chip_gen: v5e
topology: v5e:2x2
jax: 0.10.0
libtpu: 0.0.40
codegen_flags: <defaults>
</compile_context>

<pallas_src>
import jax
import jax.numpy as jnp
import numpy as np
from jax.experimental import pallas as pl
from jax.experimental.pallas import tpu as pltpu

HIDDEN = 32
INPUT = 2
NUM_CLASSES = 2


def lstm_classifier_kernel(x_ref, wih_t_ref, whh_t_ref, b_ref, fcw_t_ref, fcb_ref, out_ref):
    """Full LSTM recurrence + final linear layer for one batch tile.

    x_ref:     (T, TB, I)   time-major input, batch on the sublane axis
    wih_t_ref: (I, 4H)      lstm.weight_ih_l0^T
    whh_t_ref: (H, 4H)      lstm.weight_hh_l0^T  (stationary MXU operand)
    b_ref:     (1, 4H)      b_ih + b_hh as a row
    fcw_t_ref: (H, C)       fc.weight^T
    fcb_ref:   (1, C)       fc.bias as a row
    out_ref:   (TB, C)      logits
    """
    T, TB, I_dim = x_ref.shape
    H, H4 = whh_t_ref.shape

    # ---- Hoisted input projection (+ folded bias), no recurrence dependency ----
    # xw[t, n, :] = x[t, n, :] @ W_ih^T + (b_ih + b_hh).  I == 2, so two broadcasted
    # VPU FMAs over a lane-dense (T, TB, 4H) slab; the MXU is left to the recurrence.
    x = x_ref[...]                                   # (T, TB, I); dead after xw is built
    wih_t = wih_t_ref[...]                           # (I, 4H)
    xw = b_ref[...][None, :, :]                      # (1, 1, 4H)
    for j in range(I_dim):
        xw = xw + x[:, :, j:j + 1] * wih_t[j:j + 1, :][None, :, :]   # -> (T, TB, 4H)

    # Lane mask selecting the "g" gate window [2H, 3H) for the tanh/sigmoid select.
    lane = jax.lax.broadcasted_iota(jnp.int32, (TB, H4), 1)
    g_mask = (lane >= 2 * H) & (lane < 3 * H)

    h = jnp.zeros((TB, H), jnp.float32)
    c = jnp.zeros((TB, H), jnp.float32)

    # T is static (8 here) -> unrolled; for long sequences switch to
    # lax.fori_loop carrying (h, c) with a small unroll factor.
    for t in range(T):
        # Single MXU op per step on the critical path: (TB, H) @ (H, 4H).
        # whh^T is re-read from VMEM each step (hidden vld) to keep live ranges short.
        gates = xw[t] + jnp.dot(h, whh_t_ref[...], preferred_element_type=jnp.float32)
        # Two transcendental pushes over the full lane-dense gates tensor, then a
        # free VPU select to place tanh on the g window (PyTorch order [i, f, g, o]).
        sig = jax.nn.sigmoid(gates)
        tnh = jnp.tanh(gates)
        act = jnp.where(g_mask, tnh, sig)            # (TB, 4H)
        i_g = act[:, 0 * H:1 * H]
        f_g = act[:, 1 * H:2 * H]
        g_g = act[:, 2 * H:3 * H]
        o_g = act[:, 3 * H:4 * H]
        c = f_g * c + i_g * g_g
        h = o_g * jnp.tanh(c)

    # logits = h_last @ fc.weight^T + fc.bias   -> (TB, C)
    out_ref[...] = (
        jnp.dot(h, fcw_t_ref[...], preferred_element_type=jnp.float32) + fcb_ref[...]
    )


def _full_spec(shape):
    """Full-array (un-tiled) BlockSpec with a constant index map."""
    nd = len(shape)
    return pl.BlockSpec(tuple(shape), lambda i, nd=nd: (0,) * nd)


def lstm_classifier_forward(x, params):
    """x: (B, T, INPUT) float32 (batch-first, like PyTorch). Returns (B, 2) logits."""
    B, T, I_dim = x.shape
    assert I_dim == INPUT
    H, C = HIDDEN, NUM_CLASSES

    # Batch tile on the SUBLANE axis (gates are lane-dense: 4H = 128 lanes).
    # For B > 8 aim for >=2 grid steps so v7x's second TensorCore gets work;
    # VMEM capacity is a non-issue at these sizes, so TB is not capacity-limited.
    if B <= 8:
        TB = B
    else:
        TB = min(128, pl.cdiv(pl.cdiv(B, 2), 8) * 8)
    n_tiles = pl.cdiv(B, TB)
    B_pad = n_tiles * TB

    # Kernel-side layouts: time-major input, weights pre-transposed.
    x_k = jnp.transpose(x, (1, 0, 2)).astype(jnp.float32)             # (T, B, I)
    if B_pad != B:
        # Zero-pad the batch so no block read goes out of bounds (padded rows are
        # computed but cropped below; zeros stay finite through sigmoid/tanh).
        x_k = jnp.pad(x_k, ((0, 0), (0, B_pad - B), (0, 0)))

    wih_t = params["w_ih"].T.astype(jnp.float32)                      # (I, 4H)
    whh_t = params["w_hh"].T.astype(jnp.float32)                      # (H, 4H)
    bias = (params["b_ih"] + params["b_hh"]).reshape(1, 4 * H).astype(jnp.float32)
    fcw_t = params["fc_w"].T.astype(jnp.float32)                      # (H, C)
    fcb = params["fc_b"].reshape(1, C).astype(jnp.float32)            # (1, C)

    out = pl.pallas_call(
        lstm_classifier_kernel,
        out_shape=jax.ShapeDtypeStruct((B_pad, C), jnp.float32),
        grid_spec=pltpu.PrefetchScalarGridSpec(
            num_scalar_prefetch=0,
            grid=(n_tiles,),
            in_specs=[
                pl.BlockSpec((T, TB, I_dim), lambda i: (0, i, 0)),    # x, tiled over batch
                _full_spec(wih_t.shape),
                _full_spec(whh_t.shape),
                _full_spec(bias.shape),
                _full_spec(fcw_t.shape),
                _full_spec(fcb.shape),
            ],
            out_specs=pl.BlockSpec((TB, C), lambda i: (i, 0)),
        ),
        compiler_params=pltpu.CompilerParams(dimension_semantics=("parallel",)),
    )(x_k, wih_t, whh_t, bias, fcw_t, fcb)

    return out[:B]  # (B, C)


def init_params(key):
    """Deterministic synthetic params matching PyTorch LSTM/Linear shapes."""
    k = 1.0 / np.sqrt(HIDDEN)
    keys = jax.random.split(key, 6)
    u = lambda kk, shape: jax.random.uniform(kk, shape, jnp.float32, -k, k)
    return {
        "w_ih": u(keys[0], (4 * HIDDEN, INPUT)),    # lstm.weight_ih_l0
        "w_hh": u(keys[1], (4 * HIDDEN, HIDDEN)),   # lstm.weight_hh_l0
        "b_ih": u(keys[2], (4 * HIDDEN,)),          # lstm.bias_ih_l0
        "b_hh": u(keys[3], (4 * HIDDEN,)),          # lstm.bias_hh_l0
        "fc_w": u(keys[4], (NUM_CLASSES, HIDDEN)),  # fc.weight
        "fc_b": u(keys[5], (NUM_CLASSES,)),         # fc.bias
    }


def reference_forward(x, params):
    """Pure-JAX reference mirroring PyTorch semantics (for validation)."""
    B, T, _ = x.shape
    H = HIDDEN
    h = jnp.zeros((B, H), jnp.float32)
    c = jnp.zeros((B, H), jnp.float32)
    for t in range(T):
        gates = (x[:, t, :] @ params["w_ih"].T + params["b_ih"]
                 + h @ params["w_hh"].T + params["b_hh"])
        i_g = jax.nn.sigmoid(gates[:, 0 * H:1 * H])
        f_g = jax.nn.sigmoid(gates[:, 1 * H:2 * H])
        g_g = jnp.tanh(gates[:, 2 * H:3 * H])
        o_g = jax.nn.sigmoid(gates[:, 3 * H:4 * H])
        c = f_g * c + i_g * g_g
        h = o_g * jnp.tanh(c)
    return h @ params["fc_w"].T + params["fc_b"]


if __name__ == "__main__":
    key = jax.random.PRNGKey(0)
    k_x, k_p = jax.random.split(key)

    B, T = 2, 8
    x = jax.random.normal(k_x, (B, T, INPUT), dtype=jnp.float32)
    params = init_params(k_p)

    out = jax.block_until_ready(lstm_classifier_forward(x, params))

    ref = reference_forward(x, params)
    np.testing.assert_allclose(np.asarray(out), np.asarray(ref), rtol=1e-4, atol=1e-5)

    print("KERNEL_OK")
</pallas_src>

<mosaic_0001>
module attributes {stable_mosaic.version = 11 : i64} {
  func.func @lstm_classifier_kernel(%arg0: i32, %arg1: memref<8x2x2xf32, #tpu.memory_space<vmem>>, %arg2: memref<2x128xf32, #tpu.memory_space<vmem>>, %arg3: memref<32x128xf32, #tpu.memory_space<vmem>>, %arg4: memref<1x128xf32, #tpu.memory_space<vmem>>, %arg5: memref<32x2xf32, #tpu.memory_space<vmem>>, %arg6: memref<1x2xf32, #tpu.memory_space<vmem>>, %arg7: memref<2x2xf32, #tpu.memory_space<vmem>>) attributes {dimension_semantics = [#tpu.dimension_semantics<parallel>], iteration_bounds = array<i64: 1>, scalar_prefetch = 0 : i64, scratch_operands = 0 : i64, tpu.core_type = #tpu.core_type<tc>, window_params = [{transform_indices = @transform_0, window_bounds = array<i64: 8, 2, 2>}, {pipeline_mode = #tpu.pipeline_mode<synchronous>, transform_indices = @transform_1, window_bounds = array<i64: 2, 128>}, {pipeline_mode = #tpu.pipeline_mode<synchronous>, transform_indices = @transform_2, window_bounds = array<i64: 32, 128>}, {pipeline_mode = #tpu.pipeline_mode<synchronous>, transform_indices = @transform_3, window_bounds = array<i64: 1, 128>}, {pipeline_mode = #tpu.pipeline_mode<synchronous>, transform_indices = @transform_4, window_bounds = array<i64: 32, 2>}, {pipeline_mode = #tpu.pipeline_mode<synchronous>, transform_indices = @transform_5, window_bounds = array<i64: 1, 2>}, {transform_indices = @transform_6, window_bounds = array<i64: 2, 2>}]} {
    %c0 = arith.constant 0 : index
    %c0_0 = arith.constant 0 : index
    %c0_1 = arith.constant 0 : index
    %0 = vector.load %arg1[%c0, %c0_0, %c0_1] : memref<8x2x2xf32, #tpu.memory_space<vmem>>, vector<8x2x2xf32>
    %c0_2 = arith.constant 0 : index
    %c0_3 = arith.constant 0 : index
    %1 = vector.load %arg2[%c0_2, %c0_3] : memref<2x128xf32, #tpu.memory_space<vmem>>, vector<2x128xf32>
    %c0_4 = arith.constant 0 : index
    %c0_5 = arith.constant 0 : index
    %2 = vector.load %arg4[%c0_4, %c0_5] : memref<1x128xf32, #tpu.memory_space<vmem>>, vector<1x128xf32>
    %3 = vector.shape_cast %2 : vector<1x128xf32> to vector<1x1x128xf32>
    %4 = vector.extract_strided_slice %0 {offsets = [0, 0, 0], sizes = [8, 2, 1], strides = [1, 1, 1]} : vector<8x2x2xf32> to vector<8x2x1xf32>
    %5 = vector.extract_strided_slice %1 {offsets = [0, 0], sizes = [1, 128], strides = [1, 1]} : vector<2x128xf32> to vector<1x128xf32>
    %6 = vector.shape_cast %5 : vector<1x128xf32> to vector<1x1x128xf32>
    %7 = vector.broadcast %4 : vector<8x2x1xf32> to vector<8x2x128xf32>
    %8 = vector.broadcast %6 : vector<1x1x128xf32> to vector<8x2x128xf32>
    %9 = arith.mulf %7, %8 : vector<8x2x128xf32>
    %10 = vector.broadcast %3 : vector<1x1x128xf32> to vector<8x2x128xf32>
    %11 = arith.addf %10, %9 : vector<8x2x128xf32>
    %12 = vector.extract_strided_slice %0 {offsets = [0, 0, 1], sizes = [8, 2, 1], strides = [1, 1, 1]} : vector<8x2x2xf32> to vector<8x2x1xf32>
    %13 = vector.extract_strided_slice %1 {offsets = [1, 0], sizes = [1, 128], strides = [1, 1]} : vector<2x128xf32> to vector<1x128xf32>
    %14 = vector.shape_cast %13 : vector<1x128xf32> to vector<1x1x128xf32>
    %15 = vector.broadcast %12 : vector<8x2x1xf32> to vector<8x2x128xf32>
    %16 = vector.broadcast %14 : vector<1x1x128xf32> to vector<8x2x128xf32>
    %17 = arith.mulf %15, %16 : vector<8x2x128xf32>
    %18 = arith.addf %11, %17 : vector<8x2x128xf32>
    %19 = tpu.iota {dimensions = array<i32: 1>} : vector<2x128xi32>
    %c64_i32 = arith.constant 64 : i32
    %20 = vector.broadcast %c64_i32 : i32 to vector<2x128xi32>
    %21 = arith.cmpi sge, %19, %20 : vector<2x128xi32>
    %c96_i32 = arith.constant 96 : i32
    %22 = vector.broadcast %c96_i32 : i32 to vector<2x128xi32>
    %23 = arith.cmpi slt, %19, %22 : vector<2x128xi32>
    %24 = arith.andi %21, %23 : vector<2x128xi1>
    %cst = arith.constant 0.000000e+00 : f32
    %25 = vector.broadcast %cst : f32 to vector<2x32xf32>
    %cst_6 = arith.constant 0.000000e+00 : f32
    %26 = vector.broadcast %cst_6 : f32 to vector<2x32xf32>
    %27 = vector.extract_strided_slice %18 {offsets = [0, 0, 0], sizes = [1, 2, 128], strides = [1, 1, 1]} : vector<8x2x128xf32> to vector<1x2x128xf32>
    %28 = vector.shape_cast %27 : vector<1x2x128xf32> to vector<2x128xf32>
    %c0_7 = arith.constant 0 : index
    %c0_8 = arith.constant 0 : index
    %29 = vector.load %arg3[%c0_7, %c0_8] : memref<32x128xf32, #tpu.memory_space<vmem>>, vector<32x128xf32>
    %cst_9 = arith.constant dense<0.000000e+00> : vector<2x128xf32>
    %30 = tpu.matmul %25, %29, %cst_9 {dimension_numbers = #tpu.dot_dimension_numbers<[1], [0], [0], [1], [0, 0, 1, 1], [], []>} : vector<2x32xf32>, vector<32x128xf32>, vector<2x128xf32> -> vector<2x128xf32>
    %31 = arith.addf %28, %30 : vector<2x128xf32>
    %32 = arith.negf %31 : vector<2x128xf32>
    %33 = math.exp %32 : vector<2x128xf32>
    %cst_10 = arith.constant 1.000000e+00 : f32
    %34 = vector.broadcast %cst_10 : f32 to vector<2x128xf32>
    %35 = arith.addf %34, %33 : vector<2x128xf32>
    %36 = arith.divf %34, %35 : vector<2x128xf32>
    %37 = math.tanh %31 : vector<2x128xf32>
    %38 = arith.select %24, %37, %36 : vector<2x128xi1>, vector<2x128xf32>
    %39 = vector.extract_strided_slice %38 {offsets = [0, 0], sizes = [2, 32], strides = [1, 1]} : vector<2x128xf32> to vector<2x32xf32>
    %40 = vector.extract_strided_slice %38 {offsets = [0, 32], sizes = [2, 32], strides = [1, 1]} : vector<2x128xf32> to vector<2x32xf32>
    %41 = vector.extract_strided_slice %38 {offsets = [0, 64], sizes = [2, 32], strides = [1, 1]} : vector<2x128xf32> to vector<2x32xf32>
    %42 = vector.extract_strided_slice %38 {offsets = [0, 96], sizes = [2, 32], strides = [1, 1]} : vector<2x128xf32> to vector<2x32xf32>
    %43 = arith.mulf %40, %26 : vector<2x32xf32>
    %44 = arith.mulf %39, %41 : vector<2x32xf32>
    %45 = arith.addf %43, %44 : vector<2x32xf32>
    %46 = math.tanh %45 : vector<2x32xf32>
    %47 = arith.mulf %42, %46 : vector<2x32xf32>
    %48 = vector.extract_strided_slice %18 {offsets = [1, 0, 0], sizes = [1, 2, 128], strides = [1, 1, 1]} : vector<8x2x128xf32> to vector<1x2x128xf32>
    %49 = vector.shape_cast %48 : vector<1x2x128xf32> to vector<2x128xf32>
    %c0_11 = arith.constant 0 : index
    %c0_12 = arith.constant 0 : index
    %50 = vector.load %arg3[%c0_11, %c0_12] : memref<32x128xf32, #tpu.memory_space<vmem>>, vector<32x128xf32>
    %cst_13 = arith.constant dense<0.000000e+00> : vector<2x128xf32>
    %51 = tpu.matmul %47, %50, %cst_13 {dimension_numbers = #tpu.dot_dimension_numbers<[1], [0], [0], [1], [0, 0, 1, 1], [], []>} : vector<2x32xf32>, vector<32x128xf32>, vector<2x128xf32> -> vector<2x128xf32>
    %52 = arith.addf %49, %51 : vector<2x128xf32>
    %53 = arith.negf %52 : vector<2x128xf32>
    %54 = math.exp %53 : vector<2x128xf32>
    %cst_14 = arith.constant 1.000000e+00 : f32
    %55 = vector.broadcast %cst_14 : f32 to vector<2x128xf32>
    %56 = arith.addf %55, %54 : vector<2x128xf32>
    %57 = arith.divf %55, %56 : vector<2x128xf32>
    %58 = math.tanh %52 : vector<2x128xf32>
    %59 = arith.select %24, %58, %57 : vector<2x128xi1>, vector<2x128xf32>
    %60 = vector.extract_strided_slice %59 {offsets = [0, 0], sizes = [2, 32], strides = [1, 1]} : vector<2x128xf32> to vector<2x32xf32>
    %61 = vector.extract_strided_slice %59 {offsets = [0, 32], sizes = [2, 32], strides = [1, 1]} : vector<2x128xf32> to vector<2x32xf32>
    %62 = vector.extract_strided_slice %59 {offsets = [0, 64], sizes = [2, 32], strides = [1, 1]} : vector<2x128xf32> to vector<2x32xf32>
    %63 = vector.extract_strided_slice %59 {offsets = [0, 96], sizes = [2, 32], strides = [1, 1]} : vector<2x128xf32> to vector<2x32xf32>
    %64 = arith.mulf %61, %45 : vector<2x32xf32>
    %65 = arith.mulf %60, %62 : vector<2x32xf32>
    %66 = arith.addf %64, %65 : vector<2x32xf32>
    %67 = math.tanh %66 : vector<2x32xf32>
    %68 = arith.mulf %63, %67 : vector<2x32xf32>
    %69 = vector.extract_strided_slice %18 {offsets = [2, 0, 0], sizes = [1, 2, 128], strides = [1, 1, 1]} : vector<8x2x128xf32> to vector<1x2x128xf32>
    %70 = vector.shape_cast %69 : vector<1x2x128xf32> to vector<2x128xf32>
    %c0_15 = arith.constant 0 : index
    %c0_16 = arith.constant 0 : index
    %71 = vector.load %arg3[%c0_15, %c0_16] : memref<32x128xf32, #tpu.memory_space<vmem>>, vector<32x128xf32>
    %cst_17 = arith.constant dense<0.000000e+00> : vector<2x128xf32>
    %72 = tpu.matmul %68, %71, %cst_17 {dimension_numbers = #tpu.dot_dimension_numbers<[1], [0], [0], [1], [0, 0, 1, 1], [], []>} : vector<2x32xf32>, vector<32x128xf32>, vector<2x128xf32> -> vector<2x128xf32>
    %73 = arith.addf %70, %72 : vector<2x128xf32>
    %74 = arith.negf %73 : vector<2x128xf32>
    %75 = math.exp %74 : vector<2x128xf32>
    %cst_18 = arith.constant 1.000000e+00 : f32
    %76 = vector.broadcast %cst_18 : f32 to vector<2x128xf32>
    %77 = arith.addf %76, %75 : vector<2x128xf32>
    %78 = arith.divf %76, %77 : vector<2x128xf32>
    %79 = math.tanh %73 : vector<2x128xf32>
    %80 = arith.select %24, %79, %78 : vector<2x128xi1>, vector<2x128xf32>
    %81 = vector.extract_strided_slice %80 {offsets = [0, 0], sizes = [2, 32], strides = [1, 1]} : vector<2x128xf32> to vector<2x32xf32>
    %82 = vector.extract_strided_slice %80 {offsets = [0, 32], sizes = [2, 32], strides = [1, 1]} : vector<2x128xf32> to vector<2x32xf32>
    %83 = vector.extract_strided_slice %80 {offsets = [0, 64], sizes = [2, 32], strides = [1, 1]} : vector<2x128xf32> to vector<2x32xf32>
    %84 = vector.extract_strided_slice %80 {offsets = [0, 96], sizes = [2, 32], strides = [1, 1]} : vector<2x128xf32> to vector<2x32xf32>
    %85 = arith.mulf %82, %66 : vector<2x32xf32>
    %86 = arith.mulf %81, %83 : vector<2x32xf32>
    %87 = arith.addf %85, %86 : vector<2x32xf32>
    %88 = math.tanh %87 : vector<2x32xf32>
    %89 = arith.mulf %84, %88 : vector<2x32xf32>
    %90 = vector.extract_strided_slice %18 {offsets = [3, 0, 0], sizes = [1, 2, 128], strides = [1, 1, 1]} : vector<8x2x128xf32> to vector<1x2x128xf32>
    %91 = vector.shape_cast %90 : vector<1x2x128xf32> to vector<2x128xf32>
    %c0_19 = arith.constant 0 : index
    %c0_20 = arith.constant 0 : index
    %92 = vector.load %arg3[%c0_19, %c0_20] : memref<32x128xf32, #tpu.memory_space<vmem>>, vector<32x128xf32>
    %cst_21 = arith.constant dense<0.000000e+00> : vector<2x128xf32>
    %93 = tpu.matmul %89, %92, %cst_21 {dimension_numbers = #tpu.dot_dimension_numbers<[1], [0], [0], [1], [0, 0, 1, 1], [], []>} : vector<2x32xf32>, vector<32x128xf32>, vector<2x128xf32> -> vector<2x128xf32>
    %94 = arith.addf %91, %93 : vector<2x128xf32>
    %95 = arith.negf %94 : vector<2x128xf32>
    %96 = math.exp %95 : vector<2x128xf32>
    %cst_22 = arith.constant 1.000000e+00 : f32
    %97 = vector.broadcast %cst_22 : f32 to vector<2x128xf32>
    %98 = arith.addf %97, %96 : vector<2x128xf32>
    %99 = arith.divf %97, %98 : vector<2x128xf32>
    %100 = math.tanh %94 : vector<2x128xf32>
    %101 = arith.select %24, %100, %99 : vector<2x128xi1>, vector<2x128xf32>
    %102 = vector.extract_strided_slice %101 {offsets = [0, 0], sizes = [2, 32], strides = [1, 1]} : vector<2x128xf32> to vector<2x32xf32>
    %103 = vector.extract_strided_slice %101 {offsets = [0, 32], sizes = [2, 32], strides = [1, 1]} : vector<2x128xf32> to vector<2x32xf32>
    %104 = vector.extract_strided_slice %101 {offsets = [0, 64], sizes = [2, 32], strides = [1, 1]} : vector<2x128xf32> to vector<2x32xf32>
    %105 = vector.extract_strided_slice %101 {offsets = [0, 96], sizes = [2, 32], strides = [1, 1]} : vector<2x128xf32> to vector<2x32xf32>
    %106 = arith.mulf %103, %87 : vector<2x32xf32>
    %107 = arith.mulf %102, %104 : vector<2x32xf32>
    %108 = arith.addf %106, %107 : vector<2x32xf32>
    %109 = math.tanh %108 : vector<2x32xf32>
    %110 = arith.mulf %105, %109 : vector<2x32xf32>
    %111 = vector.extract_strided_slice %18 {offsets = [4, 0, 0], sizes = [1, 2, 128], strides = [1, 1, 1]} : vector<8x2x128xf32> to vector<1x2x128xf32>
    %112 = vector.shape_cast %111 : vector<1x2x128xf32> to vector<2x128xf32>
    %c0_23 = arith.constant 0 : index
    %c0_24 = arith.constant 0 : index
    %113 = vector.load %arg3[%c0_23, %c0_24] : memref<32x128xf32, #tpu.memory_space<vmem>>, vector<32x128xf32>
    %cst_25 = arith.constant dense<0.000000e+00> : vector<2x128xf32>
    %114 = tpu.matmul %110, %113, %cst_25 {dimension_numbers = #tpu.dot_dimension_numbers<[1], [0], [0], [1], [0, 0, 1, 1], [], []>} : vector<2x32xf32>, vector<32x128xf32>, vector<2x128xf32> -> vector<2x128xf32>
    %115 = arith.addf %112, %114 : vector<2x128xf32>
    %116 = arith.negf %115 : vector<2x128xf32>
    %117 = math.exp %116 : vector<2x128xf32>
    %cst_26 = arith.constant 1.000000e+00 : f32
    %118 = vector.broadcast %cst_26 : f32 to vector<2x128xf32>
    %119 = arith.addf %118, %117 : vector<2x128xf32>
    %120 = arith.divf %118, %119 : vector<2x128xf32>
    %121 = math.tanh %115 : vector<2x128xf32>
    %122 = arith.select %24, %121, %120 : vector<2x128xi1>, vector<2x128xf32>
    %123 = vector.extract_strided_slice %122 {offsets = [0, 0], sizes = [2, 32], strides = [1, 1]} : vector<2x128xf32> to vector<2x32xf32>
    %124 = vector.extract_strided_slice %122 {offsets = [0, 32], sizes = [2, 32], strides = [1, 1]} : vector<2x128xf32> to vector<2x32xf32>
    %125 = vector.extract_strided_slice %122 {offsets = [0, 64], sizes = [2, 32], strides = [1, 1]} : vector<2x128xf32> to vector<2x32xf32>
    %126 = vector.extract_strided_slice %122 {offsets = [0, 96], sizes = [2, 32], strides = [1, 1]} : vector<2x128xf32> to vector<2x32xf32>
    %127 = arith.mulf %124, %108 : vector<2x32xf32>
    %128 = arith.mulf %123, %125 : vector<2x32xf32>
    %129 = arith.addf %127, %128 : vector<2x32xf32>
    %130 = math.tanh %129 : vector<2x32xf32>
    %131 = arith.mulf %126, %130 : vector<2x32xf32>
    %132 = vector.extract_strided_slice %18 {offsets = [5, 0, 0], sizes = [1, 2, 128], strides = [1, 1, 1]} : vector<8x2x128xf32> to vector<1x2x128xf32>
    %133 = vector.shape_cast %132 : vector<1x2x128xf32> to vector<2x128xf32>
    %c0_27 = arith.constant 0 : index
    %c0_28 = arith.constant 0 : index
    %134 = vector.load %arg3[%c0_27, %c0_28] : memref<32x128xf32, #tpu.memory_space<vmem>>, vector<32x128xf32>
    %cst_29 = arith.constant dense<0.000000e+00> : vector<2x128xf32>
    %135 = tpu.matmul %131, %134, %cst_29 {dimension_numbers = #tpu.dot_dimension_numbers<[1], [0], [0], [1], [0, 0, 1, 1], [], []>} : vector<2x32xf32>, vector<32x128xf32>, vector<2x128xf32> -> vector<2x128xf32>
    %136 = arith.addf %133, %135 : vector<2x128xf32>
    %137 = arith.negf %136 : vector<2x128xf32>
    %138 = math.exp %137 : vector<2x128xf32>
    %cst_30 = arith.constant 1.000000e+00 : f32
    %139 = vector.broadcast %cst_30 : f32 to vector<2x128xf32>
    %140 = arith.addf %139, %138 : vector<2x128xf32>
    %141 = arith.divf %139, %140 : vector<2x128xf32>
    %142 = math.tanh %136 : vector<2x128xf32>
    %143 = arith.select %24, %142, %141 : vector<2x128xi1>, vector<2x128xf32>
    %144 = vector.extract_strided_slice %143 {offsets = [0, 0], sizes = [2, 32], strides = [1, 1]} : vector<2x128xf32> to vector<2x32xf32>
    %145 = vector.extract_strided_slice %143 {offsets = [0, 32], sizes = [2, 32], strides = [1, 1]} : vector<2x128xf32> to vector<2x32xf32>
    %146 = vector.extract_strided_slice %143 {offsets = [0, 64], sizes = [2, 32], strides = [1, 1]} : vector<2x128xf32> to vector<2x32xf32>
    %147 = vector.extract_strided_slice %143 {offsets = [0, 96], sizes = [2, 32], strides = [1, 1]} : vector<2x128xf32> to vector<2x32xf32>
    %148 = arith.mulf %145, %129 : vector<2x32xf32>
    %149 = arith.mulf %144, %146 : vector<2x32xf32>
    %150 = arith.addf %148, %149 : vector<2x32xf32>
    %151 = math.tanh %150 : vector<2x32xf32>
    %152 = arith.mulf %147, %151 : vector<2x32xf32>
    %153 = vector.extract_strided_slice %18 {offsets = [6, 0, 0], sizes = [1, 2, 128], strides = [1, 1, 1]} : vector<8x2x128xf32> to vector<1x2x128xf32>
    %154 = vector.shape_cast %153 : vector<1x2x128xf32> to vector<2x128xf32>
    %c0_31 = arith.constant 0 : index
    %c0_32 = arith.constant 0 : index
    %155 = vector.load %arg3[%c0_31, %c0_32] : memref<32x128xf32, #tpu.memory_space<vmem>>, vector<32x128xf32>
    %cst_33 = arith.constant dense<0.000000e+00> : vector<2x128xf32>
    %156 = tpu.matmul %152, %155, %cst_33 {dimension_numbers = #tpu.dot_dimension_numbers<[1], [0], [0], [1], [0, 0, 1, 1], [], []>} : vector<2x32xf32>, vector<32x128xf32>, vector<2x128xf32> -> vector<2x128xf32>
    %157 = arith.addf %154, %156 : vector<2x128xf32>
    %158 = arith.negf %157 : vector<2x128xf32>
    %159 = math.exp %158 : vector<2x128xf32>
    %cst_34 = arith.constant 1.000000e+00 : f32
    %160 = vector.broadcast %cst_34 : f32 to vector<2x128xf32>
    %161 = arith.addf %160, %159 : vector<2x128xf32>
    %162 = arith.divf %160, %161 : vector<2x128xf32>
    %163 = math.tanh %157 : vector<2x128xf32>
    %164 = arith.select %24, %163, %162 : vector<2x128xi1>, vector<2x128xf32>
    %165 = vector.extract_strided_slice %164 {offsets = [0, 0], sizes = [2, 32], strides = [1, 1]} : vector<2x128xf32> to vector<2x32xf32>
    %166 = vector.extract_strided_slice %164 {offsets = [0, 32], sizes = [2, 32], strides = [1, 1]} : vector<2x128xf32> to vector<2x32xf32>
    %167 = vector.extract_strided_slice %164 {offsets = [0, 64], sizes = [2, 32], strides = [1, 1]} : vector<2x128xf32> to vector<2x32xf32>
    %168 = vector.extract_strided_slice %164 {offsets = [0, 96], sizes = [2, 32], strides = [1, 1]} : vector<2x128xf32> to vector<2x32xf32>
    %169 = arith.mulf %166, %150 : vector<2x32xf32>
    %170 = arith.mulf %165, %167 : vector<2x32xf32>
    %171 = arith.addf %169, %170 : vector<2x32xf32>
    %172 = math.tanh %171 : vector<2x32xf32>
    %173 = arith.mulf %168, %172 : vector<2x32xf32>
    %174 = vector.extract_strided_slice %18 {offsets = [7, 0, 0], sizes = [1, 2, 128], strides = [1, 1, 1]} : vector<8x2x128xf32> to vector<1x2x128xf32>
    %175 = vector.shape_cast %174 : vector<1x2x128xf32> to vector<2x128xf32>
    %c0_35 = arith.constant 0 : index
    %c0_36 = arith.constant 0 : index
    %176 = vector.load %arg3[%c0_35, %c0_36] : memref<32x128xf32, #tpu.memory_space<vmem>>, vector<32x128xf32>
    %cst_37 = arith.constant dense<0.000000e+00> : vector<2x128xf32>
    %177 = tpu.matmul %173, %176, %cst_37 {dimension_numbers = #tpu.dot_dimension_numbers<[1], [0], [0], [1], [0, 0, 1, 1], [], []>} : vector<2x32xf32>, vector<32x128xf32>, vector<2x128xf32> -> vector<2x128xf32>
    %178 = arith.addf %175, %177 : vector<2x128xf32>
    %179 = arith.negf %178 : vector<2x128xf32>
    %180 = math.exp %179 : vector<2x128xf32>
    %cst_38 = arith.constant 1.000000e+00 : f32
    %181 = vector.broadcast %cst_38 : f32 to vector<2x128xf32>
    %182 = arith.addf %181, %180 : vector<2x128xf32>
    %183 = arith.divf %181, %182 : vector<2x128xf32>
    %184 = math.tanh %178 : vector<2x128xf32>
    %185 = arith.select %24, %184, %183 : vector<2x128xi1>, vector<2x128xf32>
    %186 = vector.extract_strided_slice %185 {offsets = [0, 0], sizes = [2, 32], strides = [1, 1]} : vector<2x128xf32> to vector<2x32xf32>
    %187 = vector.extract_strided_slice %185 {offsets = [0, 32], sizes = [2, 32], strides = [1, 1]} : vector<2x128xf32> to vector<2x32xf32>
    %188 = vector.extract_strided_slice %185 {offsets = [0, 64], sizes = [2, 32], strides = [1, 1]} : vector<2x128xf32> to vector<2x32xf32>
    %189 = vector.extract_strided_slice %185 {offsets = [0, 96], sizes = [2, 32], strides = [1, 1]} : vector<2x128xf32> to vector<2x32xf32>
    %190 = arith.mulf %187, %171 : vector<2x32xf32>
    %191 = arith.mulf %186, %188 : vector<2x32xf32>
    %192 = arith.addf %190, %191 : vector<2x32xf32>
    %193 = math.tanh %192 : vector<2x32xf32>
    %194 = arith.mulf %189, %193 : vector<2x32xf32>
    %c0_39 = arith.constant 0 : index
    %c0_40 = arith.constant 0 : index
    %195 = vector.load %arg5[%c0_39, %c0_40] : memref<32x2xf32, #tpu.memory_space<vmem>>, vector<32x2xf32>
    %cst_41 = arith.constant dense<0.000000e+00> : vector<2x2xf32>
    %196 = tpu.matmul %194, %195, %cst_41 {dimension_numbers = #tpu.dot_dimension_numbers<[1], [0], [0], [1], [0, 0, 1, 1], [], []>} : vector<2x32xf32>, vector<32x2xf32>, vector<2x2xf32> -> vector<2x2xf32>
    %c0_42 = arith.constant 0 : index
    %c0_43 = arith.constant 0 : index
    %197 = vector.load %arg6[%c0_42, %c0_43] : memref<1x2xf32, #tpu.memory_space<vmem>>, vector<1x2xf32>
    %198 = vector.broadcast %197 : vector<1x2xf32> to vector<2x2xf32>
    %199 = arith.addf %196, %198 : vector<2x2xf32>
    %c0_44 = arith.constant 0 : index
    %c0_45 = arith.constant 0 : index
    %200 = vector.load %arg7[%c0_44, %c0_45] : memref<2x2xf32, #tpu.memory_space<vmem>>, vector<2x2xf32>
    tpu.vector_store %arg7[%c0_44, %c0_45], %199 {strides = array<i32>} : memref<2x2xf32, #tpu.memory_space<vmem>>, vector<2x2xf32>,
    return
  }
  func.func @transform_0(%arg0: i32) -> (i32, i32, i32) {
    %c0_i32 = arith.constant 0 : i32
    %c0_i32_0 = arith.constant 0 : i32
    %c0_i32_1 = arith.constant 0 : i32
    return %c0_i32, %arg0, %c0_i32_0 : i32, i32, i32
  }
  func.func @transform_1(%arg0: i32) -> (i32, i32) {
    %c0_i32 = arith.constant 0 : i32
    %c0_i32_0 = arith.constant 0 : i32
    %c0_i32_1 = arith.constant 0 : i32
    return %c0_i32, %c0_i32_0 : i32, i32
  }
  func.func @transform_2(%arg0: i32) -> (i32, i32) {
    %c0_i32 = arith.constant 0 : i32
    %c0_i32_0 = arith.constant 0 : i32
    %c0_i32_1 = arith.constant 0 : i32
    return %c0_i32, %c0_i32_0 : i32, i32
  }
  func.func @transform_3(%arg0: i32) -> (i32, i32) {
    %c0_i32 = arith.constant 0 : i32
    %c0_i32_0 = arith.constant 0 : i32
    %c0_i32_1 = arith.constant 0 : i32
    return %c0_i32, %c0_i32_0 : i32, i32
  }
  func.func @transform_4(%arg0: i32) -> (i32, i32) {
    %c0_i32 = arith.constant 0 : i32
    %c0_i32_0 = arith.constant 0 : i32
    %c0_i32_1 = arith.constant 0 : i32
    return %c0_i32, %c0_i32_0 : i32, i32
  }
  func.func @transform_5(%arg0: i32) -> (i32, i32) {
    %c0_i32 = arith.constant 0 : i32
    %c0_i32_0 = arith.constant 0 : i32
    %c0_i32_1 = arith.constant 0 : i32
    return %c0_i32, %c0_i32_0 : i32, i32
  }
  func.func @transform_6(%arg0: i32) -> (i32, i32) {
    %c0_i32 = arith.constant 0 : i32
    %c0_i32_0 = arith.constant 0 : i32
    return %arg0, %c0_i32 : i32, i32
  }
}

</mosaic_0001>

<llo_original>
// kernel: tpu_custom_call.1
$region0: #{tpu_custom_call.1}
  #allocation0 [shape = 'u32[]', space=smem, size = 0x4, offset = 0x4, fixed_abs, tag = 'smem constant byte address 0x4 - core index']
  #allocation1 [shape = 'u32[72,128]{1,0:T(1,128)}', space=vmem, size = 0x9000, scoped, tag = 'internal scratch']
  %s0 = inlined_call_operand.vmem [shape: f32[8,2,2], index: 0, kind: input, shape index: {}]
  %s1 = inlined_call_operand.vmem [shape: f32[2,128], index: 1, kind: input, shape index: {}]
  %s2 = inlined_call_operand.vmem [shape: f32[32,128], index: 2, kind: input, shape index: {}]
  %s3 = inlined_call_operand.vmem [shape: f32[1,128], index: 3, kind: input, shape index: {}]
  %s4 = inlined_call_operand.vmem [shape: f32[32,2], index: 4, kind: input, shape index: {}]
  %s5 = inlined_call_operand.vmem [shape: f32[1,2], index: 5, kind: input, shape index: {}]
  %s6 = inlined_call_operand.hbm [shape: f32[2,2], index: 6, kind: output, shape index: {}]
  %s7 = sld [smem:[#allocation0]]
  $region34: #{tpu_custom_call.1} parent=0
    _
  %s9 = ssub.s32 1, %s7
  %s10 = scalar_select 0, %s9, %s7
  $region1: #{tpu_custom_call.1} parent=0
    #allocation2 [shape = 'u8[1024]{0}', space=vmem, size = 0x400, scoped, tag = 'output window, operand 0, single buffered']
    #allocation3 [shape = 's32[1]{0}', space=sflag, size = 0x4, scoped, tag = 'scoped memory for tpu_custom_call.1']
    %11 = vsyncpa [#allocation3], 0
    // Predicated region
    $region2: #{tpu_custom_call.1} parent=1 // pred_check
      _
    $region3: #{tpu_custom_call.1} parent=1 // pred_check_branch
      %13 = sbr.rel (0) target = $region5
    $region4: #{tpu_custom_call.1} parent=1 // pred_region
      _
    $region5: #{tpu_custom_call.1} parent=1 // pred_fallthru
      _
    // Predicated region
    $region6: #{tpu_custom_call.1} parent=1 // pred_check
      _
    $region7: #{tpu_custom_call.1} parent=1 // pred_check_branch
      %15 = sbr.rel (0) target = $region9
    $region8: #{tpu_custom_call.1} parent=1 // pred_region
      _
    $region9: #{tpu_custom_call.1} parent=1 // pred_fallthru
      _
    // Predicated region
    $region10: #{tpu_custom_call.1} parent=1 // pred_check
      _
    $region11: #{tpu_custom_call.1} parent=1 // pred_check_branch
      %17 = sbr.rel (0) target = $region13
    $region12: #{tpu_custom_call.1} parent=1 // pred_region
      _
    $region13: #{tpu_custom_call.1} parent=1 // pred_fallthru
      _
    // Predicated region
    $region14: #{tpu_custom_call.1} parent=1 // pred_check
      _
    $region15: #{tpu_custom_call.1} parent=1 // pred_check_branch
      %19 = sbr.rel (0) target = $region17
    $region16: #{tpu_custom_call.1} parent=1 // pred_region
      _
    $region17: #{tpu_custom_call.1} parent=1 // pred_fallthru
      _
    // Predicated region
    $region18: #{tpu_custom_call.1} parent=1 // pred_check
      _
    $region19: #{tpu_custom_call.1} parent=1 // pred_check_branch
      %21 = sbr.rel (0) target = $region21
    $region20: #{tpu_custom_call.1} parent=1 // pred_region
      _
    $region21: #{tpu_custom_call.1} parent=1 // pred_fallthru
      _
    // Predicated region
    $region22: #{tpu_custom_call.1} parent=1 // pred_check
      _
    $region23: #{tpu_custom_call.1} parent=1 // pred_check_branch
      %23 = sbr.rel (0) target = $region25
    $region24: #{tpu_custom_call.1} parent=1 // pred_region
      _
    $region25: #{tpu_custom_call.1} parent=1 // pred_fallthru
      _
    %v24 = vld [vmem:[%s0] sm:$0x3]
    %v25 = vld [vmem:[%s0 + $0x2] sm:$0x3]
    %v26 = vld [vmem:[%s0 + $0x4] sm:$0x3]
    %v27 = vld [vmem:[%s0 + $0x6] sm:$0x3]
    %v28 = vld [vmem:[%s0 + $0x8] sm:$0x3]
    %v29 = vld [vmem:[%s0 + $0xa] sm:$0x3]
    %v30 = vld [vmem:[%s0 + $0xc] sm:$0x3]
    %v31 = vld [vmem:[%s0 + $0xe] sm:$0x3]
    %v32 = vld [vmem:[%s1] sm:$0x3]
    %v33 = vld [vmem:[%s3] sm:$0x1]
    %35 = vset.pattern.permute.xlu0 0
    %36 = vperm.xlu0 %35, %v24
    %v37 = vpop.permute.xlu0 %36
    %40 = vset.pattern.permute.xlu0 0
    %41 = vperm.xlu0 %40, %v25
    %v42 = vpop.permute.xlu0 %41
    %45 = vset.pattern.permute.xlu0 0
    %46 = vperm.xlu0 %45, %v26
    %v47 = vpop.permute.xlu0 %46
    %50 = vset.pattern.permute.xlu0 0
    %51 = vperm.xlu0 %50, %v27
    %v52 = vpop.permute.xlu0 %51
    %55 = vset.pattern.permute.xlu0 0
    %56 = vperm.xlu0 %55, %v28
    %v57 = vpop.permute.xlu0 %56
    %60 = vset.pattern.permute.xlu0 0
    %61 = vperm.xlu0 %60, %v29
    %v62 = vpop.permute.xlu0 %61
    %65 = vset.pattern.permute.xlu0 0
    %66 = vperm.xlu0 %65, %v30
    %v67 = vpop.permute.xlu0 %66
    %70 = vset.pattern.permute.xlu0 0
    %71 = vperm.xlu0 %70, %v31
    %v72 = vpop.permute.xlu0 %71
    %v74 = vperm.slane %v32, 0
    %v75 = vmul.f32 %v37, %v74
    %v76 = vmul.f32 %v42, %v74
    %v77 = vmul.f32 %v47, %v74
    %v78 = vmul.f32 %v52, %v74
    %v79 = vmul.f32 %v57, %v74
    %v80 = vmul.f32 %v62, %v74
    %v81 = vmul.f32 %v67, %v74
    %v82 = vmul.f32 %v72, %v74
    %v84 = vperm.slane %v33, 0
    %v86 = vadd.f32 %v84, %v75
    %v87 = vadd.f32 %v84, %v76
    %v88 = vadd.f32 %v84, %v77
    %v89 = vadd.f32 %v84, %v78
    %v90 = vadd.f32 %v84, %v79
    %v91 = vadd.f32 %v84, %v80
    %v92 = vadd.f32 %v84, %v81
    %v93 = vadd.f32 %v84, %v82
    %94 = vset.pattern.permute.xlu0 1
    %95 = vperm.xlu0 %94, %v24
    %v96 = vpop.permute.xlu0 %95
    %98 = vset.pattern.permute.xlu0 1
    %99 = vperm.xlu0 %98, %v25
    %v100 = vpop.permute.xlu0 %99
    %102 = vset.pattern.permute.xlu0 1
    %103 = vperm.xlu0 %102, %v26
    %v104 = vpop.permute.xlu0 %103
    %106 = vset.pattern.permute.xlu0 1
    %107 = vperm.xlu0 %106, %v27
    %v108 = vpop.permute.xlu0 %107
    %110 = vset.pattern.permute.xlu0 1
    %111 = vperm.xlu0 %110, %v28
    %v112 = vpop.permute.xlu0 %111
    %114 = vset.pattern.permute.xlu0 1
    %115 = vperm.xlu0 %114, %v29
    %v116 = vpop.permute.xlu0 %115
    %118 = vset.pattern.permute.xlu0 1
    %119 = vperm.xlu0 %118, %v30
    %v120 = vpop.permute.xlu0 %119
    %122 = vset.pattern.permute.xlu0 1
    %123 = vperm.xlu0 %122, %v31
    %v124 = vpop.permute.xlu0 %123
    %v126 = vperm.slane %v32, 1
    %v127 = vmul.f32 %v96, %v126
    %v128 = vmul.f32 %v100, %v126
    %v129 = vmul.f32 %v104, %v126
    %v130 = vmul.f32 %v108, %v126
    %v131 = vmul.f32 %v112, %v126
    %v132 = vmul.f32 %v116, %v126
    %v133 = vmul.f32 %v120, %v126
    %v134 = vmul.f32 %v124, %v126
    %v135 = vadd.f32 %v86, %v127
    %v136 = vadd.f32 %v87, %v128
    %v137 = vadd.f32 %v88, %v129
    %v138 = vadd.f32 %v89, %v130
    %v139 = vadd.f32 %v90, %v131
    %v140 = vadd.f32 %v91, %v132
    %v141 = vadd.f32 %v92, %v133
    %v142 = vadd.f32 %v93, %v134
    %v143 = vlaneseq
    %v144 = vand.u32 %v143, 127
    %vm145 = vcmp.ge.s32.totalorder %v144, 64
    %vm146 = vcmp.lt.s32.totalorder %v144, 96
    %vm147 = vmand %vm145, %vm146
    %v148 = vld [vmem:[%s2] sm:$0xff]
    %v149 = vld [vmem:[%s2 + $0x8] sm:$0xff]
    %v150 = vld [vmem:[%s2 + $0x10] sm:$0xff]
    %v151 = vld [vmem:[%s2 + $0x18] sm:$0xff]
    %vm152 = vcmask 261120
    %v154 = vsel %vm152, 0.0, 0
    %156 = vmatpush.msra.mxu0 0.0
    %157 = vmatpush.msra.mxu0 0.0
    %158 = vmatpush.msra.mxu0 0.0
    %159 = vmatpush.msra.mxu0 0.0
    %160 = vmatpush.msra.mxu0 0.0
    %161 = vmatpush.msra.mxu0 0.0
    %162 = vmatpush.msra.mxu0 0.0
    %163 = vmatpush.msra.mxu0 0.0
    %164 = vmatpush.msra.mxu0 0.0
    %165 = vmatpush.msra.mxu0 0.0
    %166 = vmatpush.msra.mxu0 0.0
    %167 = vmatpush.msra.mxu0 0.0
    %168 = vmatpush.msra.mxu0 %v151
    %169 = vmatpush.msra.mxu0 %v150
    %170 = vmatpush.msra.mxu0 %v149
    %171 = vmatpush.msra.mxu0 %v148
    %172 = vmatmul.f32.gmra.mxu0 %v154
    %v173 = vpop.f32.mrf.mxu0
    %v174 = vadd.f32 0.0, %v173
    %175 = vdwg.mxu0
    %v176 = vadd.f32 %v135, %v174
    %v177 = vxor.u32 %v176, 2147483648
    %v178 = vmul.f32 %v177, 1.442695
    %v179 = vpow.pop %v178
    %v180 = vadd.f32 %v179, 1.0
    %v181 = vrcp.pop %v180
    %v182 = vmul.f32 %v180, %v181
    %v183 = vsub.f32 1.0, %v182
    %v184 = vmul.f32 %v181, %v183
    %v185 = vadd.f32 %v181, %v184
    %vm186 = vweird.f32 %v180
    %vm187 = vweird.f32 %v181
    %vm188 = vmor %vm186, %vm187
    %v189 = vsel %vm188, %v181, %v185
    %v190 = vand.u32 2147483647, %v180
    %vm191 = vcmp.eq.f32.partialorder %v190, 8.507059e+37
    %v192 = vand.u32 %v180, 2147483648
    %v193 = vor.u32 1.1754944e-38, %v192
    %v194 = vsel %vm191, %v193, %v189
    %v195 = vmul.f32 1.0, %v194
    %v196 = vtanh.pop %v176
    %v197 = vsel %vm147, %v196, %v195
    %v198 = vmul.f32 %v197, 0.0
    %200 = vrot.lane.b32.xlu0 %v197, 64
    %v201 = vpop.permute.xlu0 %200
    %v203 = vmul.f32 %v197, %v201
    %205 = vrot.lane.b32.xlu0 %v203, 32
    %v206 = vpop.permute.xlu0 %205
    %v208 = vadd.f32 %v198, %v206
    %v209 = vtanh.pop %v208
    %211 = vrot.lane.b32.xlu0 %v209, 64
    %v212 = vpop.permute.xlu0 %211
    %v214 = vmul.f32 %v197, %v212
    %216 = vrot.lane.b32.xlu0 %v214, 32
    %v217 = vpop.permute.xlu0 %216
    %v218 = vsel %vm152, %v217, 0
    %220 = vmatpush.msra.mxu0 0.0
    %221 = vmatpush.msra.mxu0 0.0
    %222 = vmatpush.msra.mxu0 0.0
    %223 = vmatpush.msra.mxu0 0.0
    %224 = vmatpush.msra.mxu0 0.0
    %225 = vmatpush.msra.mxu0 0.0
    %226 = vmatpush.msra.mxu0 0.0
    %227 = vmatpush.msra.mxu0 0.0
    %228 = vmatpush.msra.mxu0 0.0
    %229 = vmatpush.msra.mxu0 0.0
    %230 = vmatpush.msra.mxu0 0.0
    %231 = vmatpush.msra.mxu0 0.0
    %232 = vmatpush.msra.mxu0 %v151
    %233 = vmatpush.msra.mxu0 %v150
    %234 = vmatpush.msra.mxu0 %v149
    %235 = vmatpush.msra.mxu0 %v148
    %236 = vmatmul.f32.gmra.mxu0 %v218
    %v237 = vpop.f32.mrf.mxu0
    %v238 = vadd.f32 0.0, %v237
    %239 = vdwg.mxu0
    %v240 = vadd.f32 %v136, %v238
    %v241 = vxor.u32 %v240, 2147483648
    %v242 = vmul.f32 %v241, 1.442695
    %v243 = vpow.pop %v242
    %v244 = vadd.f32 %v243, 1.0
    %v245 = vrcp.pop %v244
    %v246 = vmul.f32 %v244, %v245
    %v247 = vsub.f32 1.0, %v246
    %v248 = vmul.f32 %v245, %v247
    %v249 = vadd.f32 %v245, %v248
    %vm250 = vweird.f32 %v244
    %vm251 = vweird.f32 %v245
    %vm252 = vmor %vm250, %vm251
    %v253 = vsel %vm252, %v245, %v249
    %v254 = vand.u32 2147483647, %v244
    %vm255 = vcmp.eq.f32.partialorder %v254, 8.507059e+37
    %v256 = vand.u32 %v244, 2147483648
    %v257 = vor.u32 1.1754944e-38, %v256
    %v258 = vsel %vm255, %v257, %v253
    %v259 = vmul.f32 1.0, %v258
    %v260 = vtanh.pop %v240
    %v261 = vsel %vm147, %v260, %v259
    %v262 = vmul.f32 %v261, %v208
    %264 = vrot.lane.b32.xlu0 %v261, 64
    %v265 = vpop.permute.xlu0 %264
    %v267 = vmul.f32 %v261, %v265
    %269 = vrot.lane.b32.xlu0 %v267, 32
    %v270 = vpop.permute.xlu0 %269
    %v272 = vadd.f32 %v262, %v270
    %v273 = vtanh.pop %v272
    %275 = vrot.lane.b32.xlu0 %v273, 64
    %v276 = vpop.permute.xlu0 %275
    %v278 = vmul.f32 %v261, %v276
    %280 = vrot.lane.b32.xlu0 %v278, 32
    %v281 = vpop.permute.xlu0 %280
    %v282 = vsel %vm152, %v281, 0
    %284 = vmatpush.msra.mxu0 0.0
    %285 = vmatpush.msra.mxu0 0.0
    %286 = vmatpush.msra.mxu0 0.0
    %287 = vmatpush.msra.mxu0 0.0
    %288 = vmatpush.msra.mxu0 0.0
    %289 = vmatpush.msra.mxu0 0.0
    %290 = vmatpush.msra.mxu0 0.0
    %291 = vmatpush.msra.mxu0 0.0
    %292 = vmatpush.msra.mxu0 0.0
    %293 = vmatpush.msra.mxu0 0.0
    %294 = vmatpush.msra.mxu0 0.0
    %295 = vmatpush.msra.mxu0 0.0
    %296 = vmatpush.msra.mxu0 %v151
    %297 = vmatpush.msra.mxu0 %v150
    %298 = vmatpush.msra.mxu0 %v149
    %299 = vmatpush.msra.mxu0 %v148
    %300 = vmatmul.f32.gmra.mxu0 %v282
    %v301 = vpop.f32.mrf.mxu0
    %v302 = vadd.f32 0.0, %v301
    %303 = vdwg.mxu0
    %v304 = vadd.f32 %v137, %v302
    %v305 = vxor.u32 %v304, 2147483648
    %v306 = vmul.f32 %v305, 1.442695
    %v307 = vpow.pop %v306
    %v308 = vadd.f32 %v307, 1.0
    %v309 = vrcp.pop %v308
    %v310 = vmul.f32 %v308, %v309
    %v311 = vsub.f32 1.0, %v310
    %v312 = vmul.f32 %v309, %v311
    %v313 = vadd.f32 %v309, %v312
    %vm314 = vweird.f32 %v308
    %vm315 = vweird.f32 %v309
    %vm316 = vmor %vm314, %vm315
    %v317 = vsel %vm316, %v309, %v313
    %v318 = vand.u32 2147483647, %v308
    %vm319 = vcmp.eq.f32.partialorder %v318, 8.507059e+37
    %v320 = vand.u32 %v308, 2147483648
    %v321 = vor.u32 1.1754944e-38, %v320
    %v322 = vsel %vm319, %v321, %v317
    %v323 = vmul.f32 1.0, %v322
    %v324 = vtanh.pop %v304
    %v325 = vsel %vm147, %v324, %v323
    %v326 = vmul.f32 %v325, %v272
    %328 = vrot.lane.b32.xlu0 %v325, 64
    %v329 = vpop.permute.xlu0 %328
    %v331 = vmul.f32 %v325, %v329
    %333 = vrot.lane.b32.xlu0 %v331, 32
    %v334 = vpop.permute.xlu0 %333
    %v336 = vadd.f32 %v326, %v334
    %v337 = vtanh.pop %v336
    %339 = vrot.lane.b32.xlu0 %v337, 64
    %v340 = vpop.permute.xlu0 %339
    %v342 = vmul.f32 %v325, %v340
    %344 = vrot.lane.b32.xlu0 %v342, 32
    %v345 = vpop.permute.xlu0 %344
    %v346 = vsel %vm152, %v345, 0
    %348 = vmatpush.msra.mxu0 0.0
    %349 = vmatpush.msra.mxu0 0.0
    %350 = vmatpush.msra.mxu0 0.0
    %351 = vmatpush.msra.mxu0 0.0
    %352 = vmatpush.msra.mxu0 0.0
    %353 = vmatpush.msra.mxu0 0.0
    %354 = vmatpush.msra.mxu0 0.0
    %355 = vmatpush.msra.mxu0 0.0
    %356 = vmatpush.msra.mxu0 0.0
    %357 = vmatpush.msra.mxu0 0.0
    %358 = vmatpush.msra.mxu0 0.0
    %359 = vmatpush.msra.mxu0 0.0
    %360 = vmatpush.msra.mxu0 %v151
    %361 = vmatpush.msra.mxu0 %v150
    %362 = vmatpush.msra.mxu0 %v149
    %363 = vmatpush.msra.mxu0 %v148
    %364 = vmatmul.f32.gmra.mxu0 %v346
    %v365 = vpop.f32.mrf.mxu0
    %v366 = vadd.f32 0.0, %v365
    %367 = vdwg.mxu0
    %v368 = vadd.f32 %v138, %v366
    %v369 = vxor.u32 %v368, 2147483648
    %v370 = vmul.f32 %v369, 1.442695
    %v371 = vpow.pop %v370
    %v372 = vadd.f32 %v371, 1.0
    %v373 = vrcp.pop %v372
    %v374 = vmul.f32 %v372, %v373
    %v375 = vsub.f32 1.0, %v374
    %v376 = vmul.f32 %v373, %v375
    %v377 = vadd.f32 %v373, %v376
    %vm378 = vweird.f32 %v372
    %vm379 = vweird.f32 %v373
    %vm380 = vmor %vm378, %vm379
    %v381 = vsel %vm380, %v373, %v377
    %v382 = vand.u32 2147483647, %v372
    %vm383 = vcmp.eq.f32.partialorder %v382, 8.507059e+37
    %v384 = vand.u32 %v372, 2147483648
    %v385 = vor.u32 1.1754944e-38, %v384
    %v386 = vsel %vm383, %v385, %v381
    %v387 = vmul.f32 1.0, %v386
    %v388 = vtanh.pop %v368
    %v389 = vsel %vm147, %v388, %v387
    %v390 = vmul.f32 %v389, %v336
    %392 = vrot.lane.b32.xlu0 %v389, 64
    %v393 = vpop.permute.xlu0 %392
    %v395 = vmul.f32 %v389, %v393
    %397 = vrot.lane.b32.xlu0 %v395, 32
    %v398 = vpop.permute.xlu0 %397
    %v400 = vadd.f32 %v390, %v398
    %v401 = vtanh.pop %v400
    %403 = vrot.lane.b32.xlu0 %v401, 64
    %v404 = vpop.permute.xlu0 %403
    %v406 = vmul.f32 %v389, %v404
    %408 = vrot.lane.b32.xlu0 %v406, 32
    %v409 = vpop.permute.xlu0 %408
    %v410 = vsel %vm152, %v409, 0
    %412 = vmatpush.msra.mxu0 0.0
    %413 = vmatpush.msra.mxu0 0.0
    %414 = vmatpush.msra.mxu0 0.0
    %415 = vmatpush.msra.mxu0 0.0
    %416 = vmatpush.msra.mxu0 0.0
    %417 = vmatpush.msra.mxu0 0.0
    %418 = vmatpush.msra.mxu0 0.0
    %419 = vmatpush.msra.mxu0 0.0
    %420 = vmatpush.msra.mxu0 0.0
    %421 = vmatpush.msra.mxu0 0.0
    %422 = vmatpush.msra.mxu0 0.0
    %423 = vmatpush.msra.mxu0 0.0
    %424 = vmatpush.msra.mxu0 %v151
    %425 = vmatpush.msra.mxu0 %v150
    %426 = vmatpush.msra.mxu0 %v149
    %427 = vmatpush.msra.mxu0 %v148
    %428 = vmatmul.f32.gmra.mxu0 %v410
    %v429 = vpop.f32.mrf.mxu0
    %v430 = vadd.f32 0.0, %v429
    %431 = vdwg.mxu0
    %v432 = vadd.f32 %v139, %v430
    %v433 = vxor.u32 %v432, 2147483648
    %v434 = vmul.f32 %v433, 1.442695
    %v435 = vpow.pop %v434
    %v436 = vadd.f32 %v435, 1.0
    %v437 = vrcp.pop %v436
    %v438 = vmul.f32 %v436, %v437
    %v439 = vsub.f32 1.0, %v438
    %v440 = vmul.f32 %v437, %v439
    %v441 = vadd.f32 %v437, %v440
    %vm442 = vweird.f32 %v436
    %vm443 = vweird.f32 %v437
    %vm444 = vmor %vm442, %vm443
    %v445 = vsel %vm444, %v437, %v441
    %v446 = vand.u32 2147483647, %v436
    %vm447 = vcmp.eq.f32.partialorder %v446, 8.507059e+37
    %v448 = vand.u32 %v436, 2147483648
    %v449 = vor.u32 1.1754944e-38, %v448
    %v450 = vsel %vm447, %v449, %v445
    %v451 = vmul.f32 1.0, %v450
    %v452 = vtanh.pop %v432
    %v453 = vsel %vm147, %v452, %v451
    %v454 = vmul.f32 %v453, %v400
    %456 = vrot.lane.b32.xlu0 %v453, 64
    %v457 = vpop.permute.xlu0 %456
    %v459 = vmul.f32 %v453, %v457
    %461 = vrot.lane.b32.xlu0 %v459, 32
    %v462 = vpop.permute.xlu0 %461
    %v464 = vadd.f32 %v454, %v462
    %v465 = vtanh.pop %v464
    %467 = vrot.lane.b32.xlu0 %v465, 64
    %v468 = vpop.permute.xlu0 %467
    %v470 = vmul.f32 %v453, %v468
    %472 = vrot.lane.b32.xlu0 %v470, 32
    %v473 = vpop.permute.xlu0 %472
    %v474 = vsel %vm152, %v473, 0
    %476 = vmatpush.msra.mxu0 0.0
    %477 = vmatpush.msra.mxu0 0.0
    %478 = vmatpush.msra.mxu0 0.0
    %479 = vmatpush.msra.mxu0 0.0
    %480 = vmatpush.msra.mxu0 0.0
    %481 = vmatpush.msra.mxu0 0.0
    %482 = vmatpush.msra.mxu0 0.0
    %483 = vmatpush.msra.mxu0 0.0
    %484 = vmatpush.msra.mxu0 0.0
    %485 = vmatpush.msra.mxu0 0.0
    %486 = vmatpush.msra.mxu0 0.0
    %487 = vmatpush.msra.mxu0 0.0
    %488 = vmatpush.msra.mxu0 %v151
    %489 = vmatpush.msra.mxu0 %v150
    %490 = vmatpush.msra.mxu0 %v149
    %491 = vmatpush.msra.mxu0 %v148
    %492 = vmatmul.f32.gmra.mxu0 %v474
    %v493 = vpop.f32.mrf.mxu0
    %v494 = vadd.f32 0.0, %v493
    %495 = vdwg.mxu0
    %v496 = vadd.f32 %v140, %v494
    %v497 = vxor.u32 %v496, 2147483648
    %v498 = vmul.f32 %v497, 1.442695
    %v499 = vpow.pop %v498
    %v500 = vadd.f32 %v499, 1.0
    %v501 = vrcp.pop %v500
    %v502 = vmul.f32 %v500, %v501
    %v503 = vsub.f32 1.0, %v502
    %v504 = vmul.f32 %v501, %v503
    %v505 = vadd.f32 %v501, %v504
    %vm506 = vweird.f32 %v500
    %vm507 = vweird.f32 %v501
    %vm508 = vmor %vm506, %vm507
    %v509 = vsel %vm508, %v501, %v505
    %v510 = vand.u32 2147483647, %v500
    %vm511 = vcmp.eq.f32.partialorder %v510, 8.507059e+37
    %v512 = vand.u32 %v500, 2147483648
    %v513 = vor.u32 1.1754944e-38, %v512
    %v514 = vsel %vm511, %v513, %v509
    %v515 = vmul.f32 1.0, %v514
    %v516 = vtanh.pop %v496
    %v517 = vsel %vm147, %v516, %v515
    %v518 = vmul.f32 %v517, %v464
    %520 = vrot.lane.b32.xlu0 %v517, 64
    %v521 = vpop.permute.xlu0 %520
    %v523 = vmul.f32 %v517, %v521
    %525 = vrot.lane.b32.xlu0 %v523, 32
    %v526 = vpop.permute.xlu0 %525
    %v528 = vadd.f32 %v518, %v526
    %v529 = vtanh.pop %v528
    %531 = vrot.lane.b32.xlu0 %v529, 64
    %v532 = vpop.permute.xlu0 %531
    %v534 = vmul.f32 %v517, %v532
    %536 = vrot.lane.b32.xlu0 %v534, 32
    %v537 = vpop.permute.xlu0 %536
    %v538 = vsel %vm152, %v537, 0
    %540 = vmatpush.msra.mxu0 0.0
    %541 = vmatpush.msra.mxu0 0.0
    %542 = vmatpush.msra.mxu0 0.0
    %543 = vmatpush.msra.mxu0 0.0
    %544 = vmatpush.msra.mxu0 0.0
    %545 = vmatpush.msra.mxu0 0.0
    %546 = vmatpush.msra.mxu0 0.0
    %547 = vmatpush.msra.mxu0 0.0
    %548 = vmatpush.msra.mxu0 0.0
    %549 = vmatpush.msra.mxu0 0.0
    %550 = vmatpush.msra.mxu0 0.0
    %551 = vmatpush.msra.mxu0 0.0
    %552 = vmatpush.msra.mxu0 %v151
    %553 = vmatpush.msra.mxu0 %v150
    %554 = vmatpush.msra.mxu0 %v149
    %555 = vmatpush.msra.mxu0 %v148
    %556 = vmatmul.f32.gmra.mxu0 %v538
    %v557 = vpop.f32.mrf.mxu0
    %v558 = vadd.f32 0.0, %v557
    %559 = vdwg.mxu0
    %v560 = vadd.f32 %v141, %v558
    %v561 = vxor.u32 %v560, 2147483648
    %v562 = vmul.f32 %v561, 1.442695
    %v563 = vpow.pop %v562
    %v564 = vadd.f32 %v563, 1.0
    %v565 = vrcp.pop %v564
    %v566 = vmul.f32 %v564, %v565
    %v567 = vsub.f32 1.0, %v566
    %v568 = vmul.f32 %v565, %v567
    %v569 = vadd.f32 %v565, %v568
    %vm570 = vweird.f32 %v564
    %vm571 = vweird.f32 %v565
    %vm572 = vmor %vm570, %vm571
    %v573 = vsel %vm572, %v565, %v569
    %v574 = vand.u32 2147483647, %v564
    %vm575 = vcmp.eq.f32.partialorder %v574, 8.507059e+37
    %v576 = vand.u32 %v564, 2147483648
    %v577 = vor.u32 1.1754944e-38, %v576
    %v578 = vsel %vm575, %v577, %v573
    %v579 = vmul.f32 1.0, %v578
    %v580 = vtanh.pop %v560
    %v581 = vsel %vm147, %v580, %v579
    %v582 = vmul.f32 %v581, %v528
    %584 = vrot.lane.b32.xlu0 %v581, 64
    %v585 = vpop.permute.xlu0 %584
    %v587 = vmul.f32 %v581, %v585
    %589 = vrot.lane.b32.xlu0 %v587, 32
    %v590 = vpop.permute.xlu0 %589
    %v592 = vadd.f32 %v582, %v590
    %v593 = vtanh.pop %v592
    %595 = vrot.lane.b32.xlu0 %v593, 64
    %v596 = vpop.permute.xlu0 %595
    %v598 = vmul.f32 %v581, %v596
    %600 = vrot.lane.b32.xlu0 %v598, 32
    %v601 = vpop.permute.xlu0 %600
    %v602 = vsel %vm152, %v601, 0
    %604 = vmatpush.msra.mxu0 0.0
    %605 = vmatpush.msra.mxu0 0.0
    %606 = vmatpush.msra.mxu0 0.0
    %607 = vmatpush.msra.mxu0 0.0
    %608 = vmatpush.msra.mxu0 0.0
    %609 = vmatpush.msra.mxu0 0.0
    %610 = vmatpush.msra.mxu0 0.0
    %611 = vmatpush.msra.mxu0 0.0
    %612 = vmatpush.msra.mxu0 0.0
    %613 = vmatpush.msra.mxu0 0.0
    %614 = vmatpush.msra.mxu0 0.0
    %615 = vmatpush.msra.mxu0 0.0
    %616 = vmatpush.msra.mxu0 %v151
    %617 = vmatpush.msra.mxu0 %v150
    %618 = vmatpush.msra.mxu0 %v149
    %619 = vmatpush.msra.mxu0 %v148
    %620 = vmatmul.f32.gmra.mxu0 %v602
    %v621 = vpop.f32.mrf.mxu0
    %v622 = vadd.f32 0.0, %v621
    %623 = vdwg.mxu0
    %v624 = vadd.f32 %v142, %v622
    %v625 = vxor.u32 %v624, 2147483648
    %v626 = vmul.f32 %v625, 1.442695
    %v627 = vpow.pop %v626
    %v628 = vadd.f32 %v627, 1.0
    %v629 = vrcp.pop %v628
    %v630 = vmul.f32 %v628, %v629
    %v631 = vsub.f32 1.0, %v630
    %v632 = vmul.f32 %v629, %v631
    %v633 = vadd.f32 %v629, %v632
    %vm634 = vweird.f32 %v628
    %vm635 = vweird.f32 %v629
    %vm636 = vmor %vm634, %vm635
    %v637 = vsel %vm636, %v629, %v633
    %v638 = vand.u32 2147483647, %v628
    %vm639 = vcmp.eq.f32.partialorder %v638, 8.507059e+37
    %v640 = vand.u32 %v628, 2147483648
    %v641 = vor.u32 1.1754944e-38, %v640
    %v642 = vsel %vm639, %v641, %v637
    %v643 = vmul.f32 1.0, %v642
    %v644 = vtanh.pop %v624
    %v645 = vsel %vm147, %v644, %v643
    %v646 = vmul.f32 %v645, %v592
    %648 = vrot.lane.b32.xlu0 %v645, 64
    %v649 = vpop.permute.xlu0 %648
    %v651 = vmul.f32 %v645, %v649
    %653 = vrot.lane.b32.xlu0 %v651, 32
    %v654 = vpop.permute.xlu0 %653
    %v656 = vadd.f32 %v646, %v654
    %v657 = vtanh.pop %v656
    %659 = vrot.lane.b32.xlu0 %v657, 64
    %v660 = vpop.permute.xlu0 %659
    %v662 = vmul.f32 %v645, %v660
    %v663 = vld [vmem:[%s4] sm:$0xff]
    %v664 = vld [vmem:[%s4 + $0x8] sm:$0xff]
    %v665 = vld [vmem:[%s4 + $0x10] sm:$0xff]
    %v666 = vld [vmem:[%s4 + $0x18] sm:$0xff]
    %v667 = vld [vmem:[%s5] sm:$0x1]
    %v669 = vperm.slane %v667, 0
    %672 = vrot.lane.b32.xlu0 %v662, 32
    %v673 = vpop.permute.xlu0 %672
    %v674 = vsel %vm152, %v673, 0
    %676 = vmatpush.msra.mxu0 0.0
    %677 = vmatpush.msra.mxu0 0.0
    %678 = vmatpush.msra.mxu0 0.0
    %679 = vmatpush.msra.mxu0 0.0
    %680 = vmatpush.msra.mxu0 0.0
    %681 = vmatpush.msra.mxu0 0.0
    %682 = vmatpush.msra.mxu0 0.0
    %683 = vmatpush.msra.mxu0 0.0
    %684 = vmatpush.msra.mxu0 0.0
    %685 = vmatpush.msra.mxu0 0.0
    %686 = vmatpush.msra.mxu0 0.0
    %687 = vmatpush.msra.mxu0 0.0
    %688 = vmatpush.msra.mxu0 %v666
    %689 = vmatpush.msra.mxu0 %v665
    %690 = vmatpush.msra.mxu0 %v664
    %691 = vmatpush.msra.mxu0 %v663
    %692 = vmatmul.f32.gmra.mxu0 %v674
    %v693 = vpop.f32.mrf.mxu0
    %v694 = vadd.f32 %v669, %v693
    %695 = vdwg.mxu0
    %vm696 = vcmask 9216
    %697 = vst.msk [vmem:[#allocation2] sm:$0x3] %vm696, %v694
    // Predicated region
    $region26: #{tpu_custom_call.1} parent=1 // pred_check
      _
    $region27: #{tpu_custom_call.1} parent=1 // pred_check_branch
      %699 = sbr.rel (0) target = $region29
    $region28: #{tpu_custom_call.1} parent=1 // pred_region
      %701 = vsyncadd [#allocation3], 0
      %s703 = sshll.u32 [#allocation2], 4
      %s704 = int_to_ptr.vmem [resolvable:$true] %s703
      %s705 = sshll.u32 %s6, 4
      %s706 = int_to_ptr.hbm [resolvable:$true] %s705
      %708 = dma.vmem_to_hbm [thread:$0]  %s704, 32, %s706, [#allocation3]
    $region29: #{tpu_custom_call.1} parent=1 // pred_fallthru
      _
    // Predicated region
    $region30: #{tpu_custom_call.1} parent=1 // pred_check
      _
    $region31: #{tpu_custom_call.1} parent=1 // pred_check_branch
      %710 = sbr.rel (0) target = $region33
    $region32: #{tpu_custom_call.1} parent=1 // pred_region
      %712 = dma.done [#allocation3], 32
    $region33: #{tpu_custom_call.1} parent=1 // pred_fallthru
      _
    %713 = vsyncpa [#allocation3], 1

</llo_original>
